<compile_context>
chip_gen: v5e
topology: v5e:2x2
jax: 0.10.0
libtpu: 0.0.40
codegen_flags: <defaults>
</compile_context>

<pallas_src>
import functools
import math

import jax
import jax.numpy as jnp
from jax import lax
from jax.experimental import pallas as pl
from jax.experimental.pallas import tpu as pltpu


def _cdiv(a, b):
    return -(-a // b)


def _round_up(v, m):
    return _cdiv(v, m) * m


# ----------------------------- kernels -------------------------------------


def _attpool_small_kernel(x_ref, w_ref, o_ref):
    """Fast path: the whole point axis fits in one tile -> plain softmax."""
    tb, n, c = x_ref.shape
    x = x_ref[...]                                               # bf16 (tb, n, c)
    logits = jnp.dot(x.reshape(tb * n, c), w_ref[...],
                     preferred_element_type=jnp.float32).reshape(tb, n, c)
    m = jnp.max(logits, axis=1, keepdims=True)
    p = jnp.exp(logits - m)                                      # f32
    denom = jnp.sum(p, axis=1)                                   # (tb, c)
    num = jnp.sum(x.astype(jnp.float32) * p, axis=1)             # (tb, c)
    o_ref[...] = (num * pl.reciprocal(denom, approx=True)).astype(o_ref.dtype)


def _attpool_kernel(x_ref, w_ref, o_ref, m_ref, l_ref, acc_ref, *, n_valid, tn):
    """Tiled path: online softmax over the point axis with VMEM accumulators."""
    n_idx = pl.program_id(1)
    tb, _, c = x_ref.shape

    @pl.when(n_idx == 0)
    def _init():
        m_ref[...] = jnp.full_like(m_ref, -jnp.inf)
        l_ref[...] = jnp.zeros_like(l_ref)
        acc_ref[...] = jnp.zeros_like(acc_ref)

    x = x_ref[...]                                               # bf16 (tb, tn, c)

    # Balanced tn => at most one partial tile. The mask is only emitted when
    # N % tn != 0 (static), and costs ~3 VALU ops per vreg of logits.
    partial = (n_valid % tn) != 0
    if partial:
        row = n_idx * tn + lax.broadcasted_iota(jnp.int32, (1, tn, 1), 1)
        valid = row < n_valid
        x = jnp.where(valid, x, jnp.zeros_like(x))               # OOB garbage out of x*p

    logits = jnp.dot(x.reshape(tb * tn, c), w_ref[...],
                     preferred_element_type=jnp.float32).reshape(tb, tn, c)
    if partial:
        logits = jnp.where(valid, logits, -jnp.inf)              # OOB rows get 0 weight

    m_prev = m_ref[...]
    m_new = jnp.maximum(m_prev, jnp.max(logits, axis=1, keepdims=True))
    alpha = jnp.exp(m_prev - m_new)
    p = jnp.exp(logits - m_new)
    l_ref[...] = alpha * l_ref[...] + jnp.sum(p, axis=1, keepdims=True)
    acc_ref[...] = alpha * acc_ref[...] + jnp.sum(
        x.astype(jnp.float32) * p, axis=1, keepdims=True)
    m_ref[...] = m_new

    @pl.when(n_idx == pl.num_programs(1) - 1)
    def _finalize():
        y = acc_ref[...] * pl.reciprocal(l_ref[...], approx=True)
        o_ref[...] = y[:, 0, :].astype(o_ref.dtype)


# ----------------------------- wrapper --------------------------------------


def attpool(x, w, b=None, *, tn_max=512, tb_max=None):
    """AttPool forward: x (B, N, C), w (C, C) -> (B, C).

    The linear bias b is accepted for API parity but dropped: softmax over the
    point axis is shift-invariant per channel, so b has zero effect on y.
    """
    B, N, C = x.shape
    assert w.shape == (C, C)
    del b

    x_bf = x.astype(jnp.bfloat16)       # halve x HBM bytes; f32 math in-kernel
    w_bf = w.astype(jnp.bfloat16)

    cost = pl.CostEstimate(
        flops=2 * B * N * C * C,
        transcendentals=B * N * C,
        bytes_accessed=B * N * C * 2 + C * C * 2 + B * C * 4)

    # --- tile selection (v7x 64 MiB VMEM-safe budget) -----------------------
    vmem_budget = 20 * 1024 * 1024
    if N <= tn_max:
        tn, n_tiles = N, 1
    else:
        n_tiles = _cdiv(N, tn_max)
        tn = _round_up(_cdiv(N, n_tiles), 8)      # balanced: padding waste < 8 rows
        n_tiles = _cdiv(N, tn)
    # per batch row: bf16 x block (double-buffered) + ~5 tile-sized f32 temporaries
    per_batch_row = tn * C * (2 * 2 + 5 * 4)
    tb = max(1, min(B, vmem_budget // max(per_batch_row, 1)))
    if tb_max is not None:
        tb = max(1, min(tb, tb_max))
    b_tiles = _cdiv(B, tb)

    cparams = pltpu.CompilerParams(
        dimension_semantics=(("parallel", "arbitrary") if n_tiles > 1
                             else ("parallel",)),
        vmem_limit_bytes=48 * 1024 * 1024)

    if n_tiles == 1:
        return pl.pallas_call(
            _attpool_small_kernel,
            out_shape=jax.ShapeDtypeStruct((B, C), jnp.float32),
            grid=(b_tiles,),
            in_specs=[pl.BlockSpec((tb, N, C), lambda bi: (bi, 0, 0)),
                      pl.BlockSpec((C, C), lambda bi: (0, 0))],
            out_specs=pl.BlockSpec((tb, C), lambda bi: (bi, 0)),
            compiler_params=cparams,
            cost_estimate=cost,
        )(x_bf, w_bf)

    kernel = functools.partial(_attpool_kernel, n_valid=N, tn=tn)
    return pl.pallas_call(
        kernel,
        out_shape=jax.ShapeDtypeStruct((B, C), jnp.float32),
        grid=(b_tiles, n_tiles),
        in_specs=[pl.BlockSpec((tb, tn, C), lambda bi, ni: (bi, ni, 0)),
                  pl.BlockSpec((C, C), lambda bi, ni: (0, 0))],
        out_specs=pl.BlockSpec((tb, C), lambda bi, ni: (bi, 0)),
        scratch_shapes=[pltpu.VMEM((tb, 1, C), jnp.float32),   # running max
                        pltpu.VMEM((tb, 1, C), jnp.float32),   # running denom
                        pltpu.VMEM((tb, 1, C), jnp.float32)],  # running weighted sum
        compiler_params=cparams,
        cost_estimate=cost,
    )(x_bf, w_bf)


def attpool_ref(x, w, b):
    """Pure-JAX reference with matching numerics (bf16 operands, f32 softmax).

    Note: b IS added here; the kernel drops it because softmax(dim=1) is
    shift-invariant per channel, so the outputs still agree.
    """
    xb = x.astype(jnp.bfloat16).astype(jnp.float32)
    wb = w.astype(jnp.bfloat16).astype(jnp.float32)
    logits = jnp.einsum("bnc,cd->bnd", xb, wb) + b
    scores = jax.nn.softmax(logits, axis=1)
    return jnp.sum(xb * scores, axis=1)


if __name__ == "__main__":
    B, N, C = 2, 64, 128                # small demo; C lane-dense (multiple of 128)
    key = jax.random.PRNGKey(0)
    kx, kw, kb = jax.random.split(key, 3)
    x = jax.random.normal(kx, (B, N, C), jnp.float32)
    w = jax.random.normal(kw, (C, C), jnp.float32) * (1.0 / math.sqrt(C))
    b = jax.random.normal(kb, (C,), jnp.float32) * 0.5

    # Fast path (single N tile).
    y = jax.block_until_ready(attpool(x, w, b))
    y_ref = attpool_ref(x, w, b)
    assert y.shape == (B, C), y.shape
    assert bool(jnp.all(jnp.isfinite(y)))
    err = float(jnp.max(jnp.abs(y - y_ref)))
    assert err < 3e-2, f"fast path max abs error {err}"

    # Tiled online-softmax path with a partial last N tile and partial batch tile.
    B2, N2 = 3, 200
    x2 = jax.random.normal(jax.random.PRNGKey(1), (B2, N2, C), jnp.float32)
    y2 = jax.block_until_ready(attpool(x2, w, b, tn_max=64, tb_max=2))
    y2_ref = attpool_ref(x2, w, b)
    assert y2.shape == (B2, C), y2.shape
    assert bool(jnp.all(jnp.isfinite(y2)))
    err2 = float(jnp.max(jnp.abs(y2 - y2_ref)))
    assert err2 < 3e-2, f"tiled path max abs error {err2}"

    print("KERNEL_OK")
</pallas_src>

<mosaic_0001>
module attributes {stable_mosaic.version = 11 : i64} {
  func.func @_attpool_small_kernel(%arg0: i32, %arg1: memref<2x64x128xbf16, #tpu.memory_space<vmem>>, %arg2: memref<128x128xbf16, #tpu.memory_space<vmem>>, %arg3: memref<2x128xf32, #tpu.memory_space<vmem>>) attributes {dimension_semantics = [#tpu.dimension_semantics<parallel>], iteration_bounds = array<i64: 1>, scalar_prefetch = 0 : i64, scratch_operands = 0 : i64, tpu.core_type = #tpu.core_type<tc>, window_params = [{transform_indices = @transform_0, window_bounds = array<i64: 2, 64, 128>}, {pipeline_mode = #tpu.pipeline_mode<synchronous>, transform_indices = @transform_1, window_bounds = array<i64: 128, 128>}, {transform_indices = @transform_2, window_bounds = array<i64: 2, 128>}]} {
    %c0 = arith.constant 0 : index
    %c0_0 = arith.constant 0 : index
    %c0_1 = arith.constant 0 : index
    %0 = vector.load %arg1[%c0, %c0_0, %c0_1] : memref<2x64x128xbf16, #tpu.memory_space<vmem>>, vector<2x64x128xbf16>
    %1 = vector.shape_cast %0 : vector<2x64x128xbf16> to vector<128x128xbf16>
    %c0_2 = arith.constant 0 : index
    %c0_3 = arith.constant 0 : index
    %2 = vector.load %arg2[%c0_2, %c0_3] : memref<128x128xbf16, #tpu.memory_space<vmem>>, vector<128x128xbf16>
    %cst = arith.constant dense<0.000000e+00> : vector<128x128xf32>
    %3 = tpu.matmul %1, %2, %cst {dimension_numbers = #tpu.dot_dimension_numbers<[1], [0], [0], [1], [0, 0, 1, 1], [], []>} : vector<128x128xbf16>, vector<128x128xbf16>, vector<128x128xf32> -> vector<128x128xf32>
    %4 = vector.shape_cast %3 : vector<128x128xf32> to vector<2x64x128xf32>
    %cst_4 = arith.constant dense<0xFF800000> : vector<2x128xf32>
    %5 = vector.multi_reduction <maximumf>, %4, %cst_4 [1] : vector<2x64x128xf32> to vector<2x128xf32>
    %6 = vector.shape_cast %5 : vector<2x128xf32> to vector<2x1x128xf32>
    %7 = vector.broadcast %6 : vector<2x1x128xf32> to vector<2x64x128xf32>
    %8 = arith.subf %4, %7 : vector<2x64x128xf32>
    %9 = math.exp %8 : vector<2x64x128xf32>
    %cst_5 = arith.constant dense<0.000000e+00> : vector<2x128xf32>
    %10 = vector.multi_reduction <add>, %9, %cst_5 [1] : vector<2x64x128xf32> to vector<2x128xf32>
    %11 = arith.extf %0 : vector<2x64x128xbf16> to vector<2x64x128xf32>
    %12 = arith.mulf %11, %9 : vector<2x64x128xf32>
    %cst_6 = arith.constant dense<0.000000e+00> : vector<2x128xf32>
    %13 = vector.multi_reduction <add>, %12, %cst_6 [1] : vector<2x64x128xf32> to vector<2x128xf32>
    %14 = tpu.reciprocal %10 {approx = true} : vector<2x128xf32> -> vector<2x128xf32>
    %15 = arith.mulf %13, %14 : vector<2x128xf32>
    %c0_7 = arith.constant 0 : index
    %c0_8 = arith.constant 0 : index
    %16 = vector.load %arg3[%c0_7, %c0_8] : memref<2x128xf32, #tpu.memory_space<vmem>>, vector<2x128xf32>
    tpu.vector_store %arg3[%c0_7, %c0_8], %15 {strides = array<i32>} : memref<2x128xf32, #tpu.memory_space<vmem>>, vector<2x128xf32>,
    return
  }
  func.func @transform_0(%arg0: i32) -> (i32, i32, i32) {
    %c0_i32 = arith.constant 0 : i32
    %c0_i32_0 = arith.constant 0 : i32
    %c0_i32_1 = arith.constant 0 : i32
    return %arg0, %c0_i32, %c0_i32_0 : i32, i32, i32
  }
  func.func @transform_1(%arg0: i32) -> (i32, i32) {
    %c0_i32 = arith.constant 0 : i32
    %c0_i32_0 = arith.constant 0 : i32
    %c0_i32_1 = arith.constant 0 : i32
    return %c0_i32, %c0_i32_0 : i32, i32
  }
  func.func @transform_2(%arg0: i32) -> (i32, i32) {
    %c0_i32 = arith.constant 0 : i32
    %c0_i32_0 = arith.constant 0 : i32
    return %arg0, %c0_i32 : i32, i32
  }
}

</mosaic_0001>

<llo_original>
// kernel: tpu_custom_call.1
$region0: #{tpu_custom_call.1}
  #allocation0 [shape = 'u32[]', space=smem, size = 0x4, offset = 0x4, fixed_abs, tag = 'smem constant byte address 0x4 - core index']
  #allocation1 [shape = 'u32[72,128]{1,0:T(1,128)}', space=vmem, size = 0x9000, scoped, tag = 'internal scratch']
  %s0 = inlined_call_operand.hbm [shape: bf16[2,64,128], index: 0, kind: input, shape index: {}]
  %s1 = inlined_call_operand.hbm [shape: bf16[128,128], index: 1, kind: input, shape index: {}]
  %s2 = inlined_call_operand.hbm [shape: f32[2,128], index: 2, kind: output, shape index: {}]
  %s3 = sld [smem:[#allocation0]]
  $region26: #{tpu_custom_call.1} parent=0
    _
  %s5 = ssub.s32 1, %s3
  %s6 = scalar_select 0, %s5, %s3
  $region1: #{tpu_custom_call.1} parent=0
    #allocation2 [shape = 'u8[32768]{0}', space=vmem, size = 0x8000, scoped, tag = 'input window, operand 0, single buffered']
    #allocation3 [shape = 's32[1]{0}', space=sflag, size = 0x4, scoped, tag = 'scoped memory for tpu_custom_call.1']
    #allocation4 [shape = 's32[1]{0}', space=sflag, size = 0x4, scoped, tag = 'scoped memory for tpu_custom_call.1']
    #allocation5 [shape = 'u8[32768]{0}', space=vmem, size = 0x8000, scoped, tag = 'input window, operand 1, single buffered']
    #allocation6 [shape = 's32[1]{0}', space=sflag, size = 0x4, scoped, tag = 'scoped memory for tpu_custom_call.1']
    #allocation7 [shape = 'u8[1024]{0}', space=vmem, size = 0x400, scoped, tag = 'output window, operand 0, single buffered']
    %7 = vsyncpa [#allocation3], 0
    %8 = vsyncpa [#allocation6], 0
    %9 = vsyncpa [#allocation4], 0
    // Predicated region
    $region2: #{tpu_custom_call.1} parent=1 // pred_check
      _
    $region3: #{tpu_custom_call.1} parent=1 // pred_check_branch
      %11 = sbr.rel (0) target = $region5
    $region4: #{tpu_custom_call.1} parent=1 // pred_region
      %13 = vsyncadd [#allocation3], 0
      %s14 = sshll.u32 %s0, 4
      %s15 = int_to_ptr.hbm [resolvable:$true] %s14
      %s16 = sshll.u32 [#allocation2], 4
      %s17 = int_to_ptr.vmem [resolvable:$true] %s16
      %22 = dma.hbm_to_vmem [thread:$0]  %s15, 1024, %s17, [#allocation3], 64, 64, 4
    $region5: #{tpu_custom_call.1} parent=1 // pred_fallthru
      _
    // Predicated region
    $region6: #{tpu_custom_call.1} parent=1 // pred_check
      _
    $region7: #{tpu_custom_call.1} parent=1 // pred_check_branch
      %24 = sbr.rel (0) target = $region9
    $region8: #{tpu_custom_call.1} parent=1 // pred_region
      %26 = vsyncadd [#allocation6], 0
      %s27 = sshll.u32 %s1, 4
      %s28 = int_to_ptr.hbm [resolvable:$true] %s27
      %s29 = sshll.u32 [#allocation5], 4
      %s30 = int_to_ptr.vmem [resolvable:$true] %s29
      %35 = dma.hbm_to_vmem [thread:$0]  %s28, 1024, %s30, [#allocation6], 64, 64, 4
    $region9: #{tpu_custom_call.1} parent=1 // pred_fallthru
      _
    // Predicated region
    $region10: #{tpu_custom_call.1} parent=1 // pred_check
      _
    $region11: #{tpu_custom_call.1} parent=1 // pred_check_branch
      %37 = sbr.rel (0) target = $region13
    $region12: #{tpu_custom_call.1} parent=1 // pred_region
      %39 = dma.done [#allocation3], 1024
    $region13: #{tpu_custom_call.1} parent=1 // pred_fallthru
      _
    // Predicated region
    $region14: #{tpu_custom_call.1} parent=1 // pred_check
      _
    $region15: #{tpu_custom_call.1} parent=1 // pred_check_branch
      %41 = sbr.rel (0) target = $region17
    $region16: #{tpu_custom_call.1} parent=1 // pred_region
      %43 = dma.done [#allocation6], 1024
    $region17: #{tpu_custom_call.1} parent=1 // pred_fallthru
      _
    %v44 = vld [vmem:[#allocation2] sm:$0xf]
    %v45 = vld [vmem:[#allocation2 + $0x4] sm:$0xf]
    %v46 = vld [vmem:[#allocation2 + $0x8] sm:$0xf]
    %v47 = vld [vmem:[#allocation2 + $0xc] sm:$0xf]
    %v48 = vld [vmem:[#allocation2 + $0x10] sm:$0xf]
    %v49 = vld [vmem:[#allocation2 + $0x14] sm:$0xf]
    %v50 = vld [vmem:[#allocation2 + $0x18] sm:$0xf]
    %v51 = vld [vmem:[#allocation2 + $0x1c] sm:$0xf]
    %v52 = vld [vmem:[#allocation2 + $0x20] sm:$0xf]
    %v53 = vld [vmem:[#allocation2 + $0x24] sm:$0xf]
    %v54 = vld [vmem:[#allocation2 + $0x28] sm:$0xf]
    %v55 = vld [vmem:[#allocation2 + $0x2c] sm:$0xf]
    %v56 = vld [vmem:[#allocation2 + $0x30] sm:$0xf]
    %v57 = vld [vmem:[#allocation2 + $0x34] sm:$0xf]
    %v58 = vld [vmem:[#allocation2 + $0x38] sm:$0xf]
    %v59 = vld [vmem:[#allocation2 + $0x3c] sm:$0xf]
    %v60 = vld [vmem:[#allocation5] sm:$0xf]
    %v61 = vld [vmem:[#allocation5 + $0x4] sm:$0xf]
    %v62 = vld [vmem:[#allocation5 + $0x8] sm:$0xf]
    %v63 = vld [vmem:[#allocation5 + $0xc] sm:$0xf]
    %v64 = vld [vmem:[#allocation5 + $0x10] sm:$0xf]
    %v65 = vld [vmem:[#allocation5 + $0x14] sm:$0xf]
    %v66 = vld [vmem:[#allocation5 + $0x18] sm:$0xf]
    %v67 = vld [vmem:[#allocation5 + $0x1c] sm:$0xf]
    %v68 = vld [vmem:[#allocation5 + $0x20] sm:$0xf]
    %v69 = vld [vmem:[#allocation5 + $0x24] sm:$0xf]
    %v70 = vld [vmem:[#allocation5 + $0x28] sm:$0xf]
    %v71 = vld [vmem:[#allocation5 + $0x2c] sm:$0xf]
    %v72 = vld [vmem:[#allocation5 + $0x30] sm:$0xf]
    %v73 = vld [vmem:[#allocation5 + $0x34] sm:$0xf]
    %v74 = vld [vmem:[#allocation5 + $0x38] sm:$0xf]
    %v75 = vld [vmem:[#allocation5 + $0x3c] sm:$0xf]
    %v92 = vunpack.c.l.b16 %v44
    %v93 = vunpack.c.l.b16 %v45
    %v94 = vunpack.c.l.b16 %v46
    %v95 = vunpack.c.l.b16 %v47
    %v96 = vunpack.c.l.b16 %v48
    %v97 = vunpack.c.l.b16 %v49
    %v98 = vunpack.c.l.b16 %v50
    %v99 = vunpack.c.l.b16 %v51
    %v100 = vunpack.c.l.b16 %v52
    %v101 = vunpack.c.l.b16 %v53
    %v102 = vunpack.c.l.b16 %v54
    %v103 = vunpack.c.l.b16 %v55
    %v104 = vunpack.c.l.b16 %v56
    %v105 = vunpack.c.l.b16 %v57
    %v106 = vunpack.c.l.b16 %v58
    %v107 = vunpack.c.l.b16 %v59
    %v108 = vpack.c.b16 %v93, %v92
    %v109 = vpack.c.b16 %v95, %v94
    %v110 = vpack.c.b16 %v97, %v96
    %v111 = vpack.c.b16 %v99, %v98
    %v112 = vpack.c.b16 %v101, %v100
    %v113 = vpack.c.b16 %v103, %v102
    %v114 = vpack.c.b16 %v105, %v104
    %v115 = vpack.c.b16 %v107, %v106
    %v140 = vunpack.c.l.b16 %v60
    %v141 = vunpack.c.l.b16 %v61
    %v142 = vunpack.c.l.b16 %v62
    %v143 = vunpack.c.l.b16 %v63
    %v144 = vunpack.c.l.b16 %v64
    %v145 = vunpack.c.l.b16 %v65
    %v146 = vunpack.c.l.b16 %v66
    %v147 = vunpack.c.l.b16 %v67
    %v148 = vunpack.c.l.b16 %v68
    %v149 = vunpack.c.l.b16 %v69
    %v150 = vunpack.c.l.b16 %v70
    %v151 = vunpack.c.l.b16 %v71
    %v152 = vunpack.c.l.b16 %v72
    %v153 = vunpack.c.l.b16 %v73
    %v154 = vunpack.c.l.b16 %v74
    %v155 = vunpack.c.l.b16 %v75
    %v156 = vpack.c.b16 %v141, %v140
    %v157 = vpack.c.b16 %v143, %v142
    %v158 = vpack.c.b16 %v145, %v144
    %v159 = vpack.c.b16 %v147, %v146
    %v160 = vpack.c.b16 %v149, %v148
    %v161 = vpack.c.b16 %v151, %v150
    %v162 = vpack.c.b16 %v153, %v152
    %v163 = vpack.c.b16 %v155, %v154
    %172 = vmatpush.bf16.msra.mxu0 %v163
    %173 = vmatpush.bf16.msra.mxu0 %v162
    %174 = vmatpush.bf16.msra.mxu0 %v161
    %175 = vmatpush.bf16.msra.mxu0 %v160
    %176 = vmatpush.bf16.msra.mxu0 %v159
    %177 = vmatpush.bf16.msra.mxu0 %v158
    %178 = vmatpush.bf16.msra.mxu0 %v157
    %179 = vmatpush.bf16.msra.mxu0 %v156
    %180 = vmatmul.bf16.gmra.mxu0 %v108
    %v181 = vpop.f32.mrf.mxu0
    %v182 = vadd.f32 0.0, %v181
    %v183 = vpop.f32.mrf.mxu0
    %v184 = vadd.f32 0.0, %v183
    %185 = vmatmul.bf16.gmra.mxu0 %v109
    %v186 = vpop.f32.mrf.mxu0
    %v187 = vadd.f32 0.0, %v186
    %v188 = vpop.f32.mrf.mxu0
    %v189 = vadd.f32 0.0, %v188
    %190 = vmatmul.bf16.gmra.mxu0 %v110
    %v191 = vpop.f32.mrf.mxu0
    %v192 = vadd.f32 0.0, %v191
    %v193 = vpop.f32.mrf.mxu0
    %v194 = vadd.f32 0.0, %v193
    %195 = vmatmul.bf16.gmra.mxu0 %v111
    %v196 = vpop.f32.mrf.mxu0
    %v197 = vadd.f32 0.0, %v196
    %v198 = vpop.f32.mrf.mxu0
    %v199 = vadd.f32 0.0, %v198
    %200 = vmatmul.bf16.gmra.mxu0 %v112
    %v201 = vpop.f32.mrf.mxu0
    %v202 = vadd.f32 0.0, %v201
    %v203 = vpop.f32.mrf.mxu0
    %v204 = vadd.f32 0.0, %v203
    %205 = vmatmul.bf16.gmra.mxu0 %v113
    %v206 = vpop.f32.mrf.mxu0
    %v207 = vadd.f32 0.0, %v206
    %v208 = vpop.f32.mrf.mxu0
    %v209 = vadd.f32 0.0, %v208
    %210 = vmatmul.bf16.gmra.mxu0 %v114
    %v211 = vpop.f32.mrf.mxu0
    %v212 = vadd.f32 0.0, %v211
    %v213 = vpop.f32.mrf.mxu0
    %v214 = vadd.f32 0.0, %v213
    %215 = vmatmul.bf16.gmra.mxu0 %v115
    %v216 = vpop.f32.mrf.mxu0
    %v217 = vadd.f32 0.0, %v216
    %v218 = vpop.f32.mrf.mxu0
    %v219 = vadd.f32 0.0, %v218
    %220 = vdwg.mxu0
    %v221 = vmax.f32 %v182, %v187
    %v222 = vmax.f32 %v184, %v189
    %v223 = vmax.f32 %v221, %v192
    %v224 = vmax.f32 %v222, %v194
    %v225 = vmax.f32 %v223, %v197
    %v226 = vmax.f32 %v224, %v199
    %v227 = vmax.f32 %v225, %v226
    %v228 = vrot.slane %v227, 4
    %v229 = vmax.f32 %v227, %v228
    %v230 = vrot.slane %v229, 2
    %v231 = vmax.f32 %v229, %v230
    %v232 = vrot.slane %v231, 1
    %v233 = vmax.f32 %v231, %v232
    %v234 = vmax.f32 %v202, %v207
    %v235 = vmax.f32 %v204, %v209
    %v236 = vmax.f32 %v234, %v212
    %v237 = vmax.f32 %v235, %v214
    %v238 = vmax.f32 %v236, %v217
    %v239 = vmax.f32 %v237, %v219
    %v240 = vmax.f32 %v238, %v239
    %v241 = vrot.slane %v240, 4
    %v242 = vmax.f32 %v240, %v241
    %v243 = vrot.slane %v242, 2
    %v244 = vmax.f32 %v242, %v243
    %v245 = vrot.slane %v244, 1
    %v246 = vmax.f32 %v244, %v245
    %v247 = vsub.f32 %v182, %v233
    %v248 = vsub.f32 %v184, %v233
    %v249 = vsub.f32 %v187, %v233
    %v250 = vsub.f32 %v189, %v233
    %v251 = vsub.f32 %v192, %v233
    %v252 = vsub.f32 %v194, %v233
    %v253 = vsub.f32 %v197, %v233
    %v254 = vsub.f32 %v199, %v233
    %v255 = vsub.f32 %v202, %v246
    %v256 = vsub.f32 %v204, %v246
    %v257 = vsub.f32 %v207, %v246
    %v258 = vsub.f32 %v209, %v246
    %v259 = vsub.f32 %v212, %v246
    %v260 = vsub.f32 %v214, %v246
    %v261 = vsub.f32 %v217, %v246
    %v262 = vsub.f32 %v219, %v246
    %v263 = vmul.f32 %v247, 1.442695
    %v264 = vpow.pop %v263
    %v265 = vmul.f32 %v248, 1.442695
    %v266 = vpow.pop %v265
    %v267 = vmul.f32 %v249, 1.442695
    %v268 = vpow.pop %v267
    %v269 = vmul.f32 %v250, 1.442695
    %v270 = vpow.pop %v269
    %v271 = vmul.f32 %v251, 1.442695
    %v272 = vpow.pop %v271
    %v273 = vmul.f32 %v252, 1.442695
    %v274 = vpow.pop %v273
    %v275 = vmul.f32 %v253, 1.442695
    %v276 = vpow.pop %v275
    %v277 = vmul.f32 %v254, 1.442695
    %v278 = vpow.pop %v277
    %v279 = vmul.f32 %v255, 1.442695
    %v280 = vpow.pop %v279
    %v281 = vmul.f32 %v256, 1.442695
    %v282 = vpow.pop %v281
    %v283 = vmul.f32 %v257, 1.442695
    %v284 = vpow.pop %v283
    %v285 = vmul.f32 %v258, 1.442695
    %v286 = vpow.pop %v285
    %v287 = vmul.f32 %v259, 1.442695
    %v288 = vpow.pop %v287
    %v289 = vmul.f32 %v260, 1.442695
    %v290 = vpow.pop %v289
    %v291 = vmul.f32 %v261, 1.442695
    %v292 = vpow.pop %v291
    %v293 = vmul.f32 %v262, 1.442695
    %v294 = vpow.pop %v293
    %v295 = vadd.f32 %v264, %v266
    %v296 = vadd.f32 %v295, %v268
    %v297 = vadd.f32 %v296, %v270
    %v298 = vadd.f32 %v297, %v272
    %v299 = vadd.f32 %v298, %v274
    %v300 = vadd.f32 %v299, %v276
    %v301 = vadd.f32 %v300, %v278
    %v302 = vrot.slane %v301, 4
    %v303 = vadd.f32 %v301, %v302
    %v304 = vrot.slane %v303, 2
    %v305 = vadd.f32 %v303, %v304
    %v306 = vrot.slane %v305, 1
    %v307 = vadd.f32 %v305, %v306
    %v308 = vadd.f32 %v280, %v282
    %v309 = vadd.f32 %v308, %v284
    %v310 = vadd.f32 %v309, %v286
    %v311 = vadd.f32 %v310, %v288
    %v312 = vadd.f32 %v311, %v290
    %v313 = vadd.f32 %v312, %v292
    %v314 = vadd.f32 %v313, %v294
    %v315 = vrot.slane %v314, 4
    %v316 = vadd.f32 %v314, %v315
    %v317 = vrot.slane %v316, 2
    %v318 = vadd.f32 %v316, %v317
    %v319 = vrot.slane %v318, 1
    %v320 = vadd.f32 %v318, %v319
    %v321 = vunpack.c.l.bf16 %v44
    %v322 = vunpack.c.l.bf16 %v45
    %v323 = vunpack.c.l.bf16 %v46
    %v324 = vunpack.c.l.bf16 %v47
    %v325 = vunpack.c.l.bf16 %v48
    %v326 = vunpack.c.l.bf16 %v49
    %v327 = vunpack.c.l.bf16 %v50
    %v328 = vunpack.c.l.bf16 %v51
    %v329 = vunpack.c.l.bf16 %v52
    %v330 = vunpack.c.l.bf16 %v53
    %v331 = vunpack.c.l.bf16 %v54
    %v332 = vunpack.c.l.bf16 %v55
    %v333 = vunpack.c.l.bf16 %v56
    %v334 = vunpack.c.l.bf16 %v57
    %v335 = vunpack.c.l.bf16 %v58
    %v336 = vunpack.c.l.bf16 %v59
    %v337 = vmul.f32 %v321, %v264
    %v338 = vmul.f32 %v322, %v266
    %v339 = vmul.f32 %v323, %v268
    %v340 = vmul.f32 %v324, %v270
    %v341 = vmul.f32 %v325, %v272
    %v342 = vmul.f32 %v326, %v274
    %v343 = vmul.f32 %v327, %v276
    %v344 = vmul.f32 %v328, %v278
    %v345 = vmul.f32 %v329, %v280
    %v346 = vmul.f32 %v330, %v282
    %v347 = vmul.f32 %v331, %v284
    %v348 = vmul.f32 %v332, %v286
    %v349 = vmul.f32 %v333, %v288
    %v350 = vmul.f32 %v334, %v290
    %v351 = vmul.f32 %v335, %v292
    %v352 = vmul.f32 %v336, %v294
    %v353 = vadd.f32 %v337, %v338
    %v354 = vadd.f32 %v353, %v339
    %v355 = vadd.f32 %v354, %v340
    %v356 = vadd.f32 %v355, %v341
    %v357 = vadd.f32 %v356, %v342
    %v358 = vadd.f32 %v357, %v343
    %v359 = vadd.f32 %v358, %v344
    %v360 = vrot.slane %v359, 4
    %v361 = vadd.f32 %v359, %v360
    %v362 = vrot.slane %v361, 2
    %v363 = vadd.f32 %v361, %v362
    %v364 = vrot.slane %v363, 1
    %v365 = vadd.f32 %v363, %v364
    %v366 = vadd.f32 %v345, %v346
    %v367 = vadd.f32 %v366, %v347
    %v368 = vadd.f32 %v367, %v348
    %v369 = vadd.f32 %v368, %v349
    %v370 = vadd.f32 %v369, %v350
    %v371 = vadd.f32 %v370, %v351
    %v372 = vadd.f32 %v371, %v352
    %v373 = vrot.slane %v372, 4
    %v374 = vadd.f32 %v372, %v373
    %v375 = vrot.slane %v374, 2
    %v376 = vadd.f32 %v374, %v375
    %v377 = vrot.slane %v376, 1
    %v378 = vadd.f32 %v376, %v377
    %v379 = vrcp.pop %v307
    %v380 = vrcp.pop %v320
    %v381 = vmul.f32 %v365, %v379
    %v382 = vmul.f32 %v378, %v380
    %vm385 = vcmask 1041409
    %v386 = vsel %vm385, %v382, %v381
    %388 = vst [vmem:[#allocation7] sm:$0x3] %v386
    // Predicated region
    $region18: #{tpu_custom_call.1} parent=1 // pred_check
      _
    $region19: #{tpu_custom_call.1} parent=1 // pred_check_branch
      %390 = sbr.rel (0) target = $region21
    $region20: #{tpu_custom_call.1} parent=1 // pred_region
      %392 = vsyncadd [#allocation4], 0
      %s394 = sshll.u32 [#allocation7], 4
      %s395 = int_to_ptr.vmem [resolvable:$true] %s394
      %s396 = sshll.u32 %s2, 4
      %s397 = int_to_ptr.hbm [resolvable:$true] %s396
      %399 = dma.vmem_to_hbm [thread:$0]  %s395, 32, %s397, [#allocation4]
    $region21: #{tpu_custom_call.1} parent=1 // pred_fallthru
      _
    // Predicated region
    $region22: #{tpu_custom_call.1} parent=1 // pred_check
      _
    $region23: #{tpu_custom_call.1} parent=1 // pred_check_branch
      %401 = sbr.rel (0) target = $region25
    $region24: #{tpu_custom_call.1} parent=1 // pred_region
      %403 = dma.done [#allocation4], 32
    $region25: #{tpu_custom_call.1} parent=1 // pred_fallthru
      _
    %404 = vsyncpa [#allocation3], 1
    %405 = vsyncpa [#allocation6], 1
    %406 = vsyncpa [#allocation4], 1

</llo_original>
